<compile_context>
chip_gen: v6e
topology: v6e:2x2x1
jax: 0.10.0
libtpu: 0.0.40
codegen_flags: <defaults>
</compile_context>

<pallas_src>
import jax
import jax.numpy as jnp
from jax.experimental import pallas as pl
from jax.experimental.pallas import tpu as pltpu


def cvae_forward_kernel(xy1_ref, w1a_ref, wf_ref, w3p_ref, bout_ref, out_ref):
    hidden = w1a_ref.shape[1] // 2
    out_w = out_ref.shape[1]
    cd = w1a_ref.dtype                     # MXU input dtype (bf16 or f32)

    # ---- matmul 1: encoder hidden AND decoder y/bias path in one pass ----
    # [x|y|1|0] @ [[W1 , 0   ],
    #              [W1y, W2y ],
    #              [b1 , b2* ],        b2* = b2 + bmu @ W2z   (z = mu in eval mode)
    #              [0  , 0   ]]
    enc = jnp.dot(xy1_ref[...], w1a_ref[...], preferred_element_type=jnp.float32)
    h = jnp.maximum(enc[:, :hidden], 0.0)          # relu(cat([x,y]) @ W1 + b1), f32
    yb = enc[:, hidden:]                           # y @ W2y + b2 + bmu @ W2z (pre-relu)

    # ---- matmul 2: fused heads + decoder z-path, 256-lane wide (fills v6e/v7x MXU) ----
    # lanes [0:out_w]        = [h@Wmu | h@Wlv | 0]          (bias-free heads)
    # lanes [out_w:out_w+H]  = h @ (Wmu @ W2z)               (z-path, z = mu)
    fused = jnp.dot(h.astype(cd), wf_ref[...], preferred_element_type=jnp.float32)
    heads = fused[:, :out_w]
    hz = fused[:, out_w:]

    # TODO(synk): training-mode reparameterize (eps * exp(0.5*log_var) + mu) would use
    # pltpu.prng_seed / pltpu.prng_random_bits; only the eval path (z = mu) is here.

    h2 = jnp.maximum(hz + yb, 0.0)                 # decoder hidden

    # ---- packed lane-dense output: [mu | log_var | x_recon | 0] ----
    out_ref[...] = heads + bout_ref[...]           # adds bmu | blv | b3 (f32)
    out_ref[...] += jnp.dot(h2.astype(cd), w3p_ref[...],
                            preferred_element_type=jnp.float32)


def pack_params(p, *, data_dim, n_cond, latent_dim, compute_dtype=jnp.bfloat16):
    """One-time parameter packing/fusion for the kernel (plain JAX, outside kernel)."""
    hidden = p["w1"].shape[1]
    two_l = 2 * latent_dim
    out_w = max(128, ((two_l + data_dim + 127) // 128) * 128)
    kin = data_dim + n_cond + 1                    # [x | y | 1]
    kin_pad = ((kin + 7) // 8) * 8                 # sublane-aligned

    w2z = p["w2"][:latent_dim]                     # (L, H) decoder z-path weight
    w2y = p["w2"][latent_dim:]                     # (C, H) decoder y-path weight
    w_hz = p["wmu"] @ w2z                          # (H, H) fused z-path (eval z = mu)
    b2_eff = p["b2"] + p["bmu"] @ w2z              # fold mu bias into decoder bias

    # fused encoder / decoder-y weight: (kin_pad, 2H)
    w1a = jnp.zeros((kin_pad, 2 * hidden), jnp.float32)
    w1a = w1a.at[:data_dim + n_cond, :hidden].set(p["w1"])
    w1a = w1a.at[data_dim + n_cond, :hidden].set(p["b1"])
    w1a = w1a.at[data_dim:data_dim + n_cond, hidden:].set(w2y)
    w1a = w1a.at[data_dim + n_cond, hidden:].set(b2_eff)

    # fused heads + z-path weight: (H, out_w + H); lanes [0:2L]=[Wmu|Wlv], [out_w:]=W_hz
    wf = jnp.zeros((hidden, out_w + hidden), jnp.float32)
    wf = wf.at[:, :latent_dim].set(p["wmu"])
    wf = wf.at[:, latent_dim:two_l].set(p["wlv"])
    wf = wf.at[:, out_w:].set(w_hz)

    # reconstruction weight placed into lanes [2L : 2L+D] of the packed output
    w3p = jnp.zeros((hidden, out_w), jnp.float32)
    w3p = w3p.at[:, two_l:two_l + data_dim].set(p["w3"])

    # packed output bias: [bmu | blv | b3 | 0]  (kept f32, added post-accumulation)
    b_out = jnp.zeros((1, out_w), jnp.float32)
    b_out = b_out.at[0, :latent_dim].set(p["bmu"])
    b_out = b_out.at[0, latent_dim:two_l].set(p["blv"])
    b_out = b_out.at[0, two_l:two_l + data_dim].set(p["b3"])

    cd = compute_dtype
    return dict(
        w1a=w1a.astype(cd), wf=wf.astype(cd), w3p=w3p.astype(cd), b_out=b_out,
        meta=dict(data_dim=data_dim, n_cond=n_cond, latent_dim=latent_dim,
                  hidden=hidden, out_w=out_w, kin_pad=kin_pad, compute_dtype=cd),
    )


def _pick_tb(batch):
    """Generation-aware batch tile: single big tile on 1-TC chips (v5e/v6e) to
    amortize per-step overhead; >=2 parallel grid steps on dual-TC v7x."""
    try:
        kind = jax.devices()[0].device_kind.lower()
    except Exception:
        kind = ""
    if ("v7" in kind or "tpu7" in kind) and batch >= 16:
        half = -(-batch // 2)
        return max(8, -(-half // 8) * 8)           # ~B/2 -> one step per TensorCore
    return min(max(8, -(-batch // 8) * 8), 1024)   # grid=1 where possible


def cvae_forward(x, y, pp, *, tb=None):
    """x: (B, data_dim), y: (B, n_condition). Returns (mu, log_var, x_recon)."""
    meta = pp["meta"]
    B, data_dim = x.shape
    n_cond = y.shape[1]
    latent_dim, hidden = meta["latent_dim"], meta["hidden"]
    out_w, kin_pad, cd = meta["out_w"], meta["kin_pad"], meta["compute_dtype"]

    if tb is None:
        tb = _pick_tb(B)
    tb = max(8, (tb // 8) * 8)
    grid = pl.cdiv(B, tb)
    b_pad = grid * tb                               # ragged batch -> pad, slice off

    # wrapper-side concat [x | y | 1 | 0-pad]: ones column folds b1 / b2_eff into w1a
    xy1 = jnp.zeros((b_pad, kin_pad), cd)
    xy1 = xy1.at[:B, :data_dim].set(x.astype(cd))
    xy1 = xy1.at[:B, data_dim:data_dim + n_cond].set(y.astype(cd))
    xy1 = xy1.at[:B, data_dim + n_cond].set(1.0)

    def rep(shape):
        # whole-array block, replicated (constant block index) across the batch grid
        return pl.BlockSpec(shape, lambda i: (0, 0))

    packed = pl.pallas_call(
        cvae_forward_kernel,
        out_shape=jax.ShapeDtypeStruct((b_pad, out_w), jnp.float32),
        grid_spec=pltpu.PrefetchScalarGridSpec(
            num_scalar_prefetch=0,
            grid=(grid,),
            in_specs=[
                pl.BlockSpec((tb, kin_pad), lambda i: (i, 0)),   # [x|y|1|0]
                rep((kin_pad, 2 * hidden)),                      # [W1|0 ; W2y ; b1|b2*]
                rep((hidden, out_w + hidden)),                   # [Wmu|Wlv|0 | Wmu@W2z]
                rep((hidden, out_w)),                            # W3 in recon lanes
                rep((1, out_w)),                                 # [bmu|blv|b3|0]
            ],
            out_specs=pl.BlockSpec((tb, out_w), lambda i: (i, 0)),
        ),
        compiler_params=pltpu.CompilerParams(
            dimension_semantics=("parallel",)),
    )(xy1, pp["w1a"], pp["wf"], pp["w3p"], pp["b_out"])

    mu = packed[:B, :latent_dim]
    log_var = packed[:B, latent_dim:2 * latent_dim]
    x_recon = packed[:B, 2 * latent_dim:2 * latent_dim + data_dim]
    return mu, log_var, x_recon


def init_params(key, data_dim, n_cond, latent_dim, hidden):
    """Deterministic synthetic weights (shapes match the nn.Linear layers)."""
    ks = jax.random.split(key, 5)

    def lin(k, fan_in, fan_out):
        scale = 1.0 / jnp.sqrt(fan_in)
        kw, kb = jax.random.split(k)
        w = jax.random.uniform(kw, (fan_in, fan_out), jnp.float32, -scale, scale)
        b = jax.random.uniform(kb, (fan_out,), jnp.float32, -scale, scale)
        return w, b

    w1, b1 = lin(ks[0], data_dim + n_cond, hidden)       # encoder Linear(D+C, H)
    wmu, bmu = lin(ks[1], hidden, latent_dim)            # mu head
    wlv, blv = lin(ks[2], hidden, latent_dim)            # log_var head
    w2, b2 = lin(ks[3], latent_dim + n_cond, hidden)     # decoder Linear(L+C, H)
    w3, b3 = lin(ks[4], hidden, data_dim)                # decoder out Linear(H, D)
    return dict(w1=w1, b1=b1, wmu=wmu, bmu=bmu, wlv=wlv, blv=blv,
                w2=w2, b2=b2, w3=w3, b3=b3)


def cvae_forward_ref(x, y, p):
    """Plain-JAX reference faithful to the PyTorch module (eval mode)."""
    xc = jnp.concatenate([x, y], axis=-1)
    h = jnp.maximum(xc @ p["w1"] + p["b1"], 0.0)
    mu = h @ p["wmu"] + p["bmu"]
    log_var = h @ p["wlv"] + p["blv"]
    zc = jnp.concatenate([mu, y], axis=-1)
    h2 = jnp.maximum(zc @ p["w2"] + p["b2"], 0.0)
    recon = h2 @ p["w3"] + p["b3"]
    return mu, log_var, recon


if __name__ == "__main__":
    B, data_dim, n_cond, latent_dim, hidden = 256, 16, 4, 32, 128

    key = jax.random.PRNGKey(0)
    kx, ky, kp = jax.random.split(key, 3)
    x = jax.random.normal(kx, (B, data_dim), jnp.float32)
    y = jax.random.normal(ky, (B, n_cond), jnp.float32)
    params = init_params(kp, data_dim, n_cond, latent_dim, hidden)
    mu_r, lv_r, rec_r = cvae_forward_ref(x, y, params)

    # --- exact-parity check (f32 MXU inputs): validates the packing algebra ---
    pp32 = pack_params(params, data_dim=data_dim, n_cond=n_cond,
                       latent_dim=latent_dim, compute_dtype=jnp.float32)
    mu, log_var, x_recon = cvae_forward(x, y, pp32)
    jax.block_until_ready((mu, log_var, x_recon))
    assert jnp.allclose(mu, mu_r, atol=1e-4, rtol=1e-4), "mu mismatch (f32)"
    assert jnp.allclose(log_var, lv_r, atol=1e-4, rtol=1e-4), "log_var mismatch (f32)"
    assert jnp.allclose(x_recon, rec_r, atol=1e-4, rtol=1e-4), "recon mismatch (f32)"

    # --- performance path (bf16 MXU inputs, f32 accumulation) ---
    ppbf = pack_params(params, data_dim=data_dim, n_cond=n_cond,
                       latent_dim=latent_dim, compute_dtype=jnp.bfloat16)
    mu, log_var, x_recon = cvae_forward(x, y, ppbf)
    jax.block_until_ready((mu, log_var, x_recon))
    # bf16 rounding of weights/activations across the matmul chain -> 5e-2 tolerance
    assert jnp.allclose(mu, mu_r, atol=5e-2, rtol=5e-2), "mu mismatch (bf16)"
    assert jnp.allclose(log_var, lv_r, atol=5e-2, rtol=5e-2), "log_var mismatch (bf16)"
    assert jnp.allclose(x_recon, rec_r, atol=5e-2, rtol=5e-2), "recon mismatch (bf16)"

    print("KERNEL_OK")
</pallas_src>

<mosaic_0001>
module attributes {stable_mosaic.version = 11 : i64} {
  func.func @cvae_forward_kernel(%arg0: i32, %arg1: memref<256x24xf32, #tpu.memory_space<vmem>>, %arg2: memref<24x256xf32, #tpu.memory_space<vmem>>, %arg3: memref<128x256xf32, #tpu.memory_space<vmem>>, %arg4: memref<128x128xf32, #tpu.memory_space<vmem>>, %arg5: memref<1x128xf32, #tpu.memory_space<vmem>>, %arg6: memref<256x128xf32, #tpu.memory_space<vmem>>) attributes {dimension_semantics = [#tpu.dimension_semantics<parallel>], iteration_bounds = array<i64: 1>, scalar_prefetch = 0 : i64, scratch_operands = 0 : i64, tpu.core_type = #tpu.core_type<tc>, window_params = [{transform_indices = @transform_0, window_bounds = array<i64: 256, 24>}, {pipeline_mode = #tpu.pipeline_mode<synchronous>, transform_indices = @transform_1, window_bounds = array<i64: 24, 256>}, {pipeline_mode = #tpu.pipeline_mode<synchronous>, transform_indices = @transform_2, window_bounds = array<i64: 128, 256>}, {pipeline_mode = #tpu.pipeline_mode<synchronous>, transform_indices = @transform_3, window_bounds = array<i64: 128, 128>}, {pipeline_mode = #tpu.pipeline_mode<synchronous>, transform_indices = @transform_4, window_bounds = array<i64: 1, 128>}, {transform_indices = @transform_5, window_bounds = array<i64: 256, 128>}]} {
    %c0 = arith.constant 0 : index
    %c0_0 = arith.constant 0 : index
    %0 = vector.load %arg1[%c0, %c0_0] : memref<256x24xf32, #tpu.memory_space<vmem>>, vector<256x24xf32>
    %c0_1 = arith.constant 0 : index
    %c0_2 = arith.constant 0 : index
    %1 = vector.load %arg2[%c0_1, %c0_2] : memref<24x256xf32, #tpu.memory_space<vmem>>, vector<24x256xf32>
    %cst = arith.constant dense<0.000000e+00> : vector<256x256xf32>
    %2 = tpu.matmul %0, %1, %cst {dimension_numbers = #tpu.dot_dimension_numbers<[1], [0], [0], [1], [0, 0, 1, 1], [], []>} : vector<256x24xf32>, vector<24x256xf32>, vector<256x256xf32> -> vector<256x256xf32>
    %3 = vector.extract_strided_slice %2 {offsets = [0, 0], sizes = [256, 128], strides = [1, 1]} : vector<256x256xf32> to vector<256x128xf32>
    %cst_3 = arith.constant 0.000000e+00 : f32
    %4 = vector.broadcast %cst_3 : f32 to vector<256x128xf32>
    %5 = arith.maximumf %3, %4 : vector<256x128xf32>
    %6 = vector.extract_strided_slice %2 {offsets = [0, 128], sizes = [256, 128], strides = [1, 1]} : vector<256x256xf32> to vector<256x128xf32>
    %c0_4 = arith.constant 0 : index
    %c0_5 = arith.constant 0 : index
    %7 = vector.load %arg3[%c0_4, %c0_5] : memref<128x256xf32, #tpu.memory_space<vmem>>, vector<128x256xf32>
    %cst_6 = arith.constant dense<0.000000e+00> : vector<256x256xf32>
    %8 = tpu.matmul %5, %7, %cst_6 {dimension_numbers = #tpu.dot_dimension_numbers<[1], [0], [0], [1], [0, 0, 1, 1], [], []>} : vector<256x128xf32>, vector<128x256xf32>, vector<256x256xf32> -> vector<256x256xf32>
    %9 = vector.extract_strided_slice %8 {offsets = [0, 0], sizes = [256, 128], strides = [1, 1]} : vector<256x256xf32> to vector<256x128xf32>
    %10 = vector.extract_strided_slice %8 {offsets = [0, 128], sizes = [256, 128], strides = [1, 1]} : vector<256x256xf32> to vector<256x128xf32>
    %11 = arith.addf %10, %6 : vector<256x128xf32>
    %cst_7 = arith.constant 0.000000e+00 : f32
    %12 = vector.broadcast %cst_7 : f32 to vector<256x128xf32>
    %13 = arith.maximumf %11, %12 : vector<256x128xf32>
    %c0_8 = arith.constant 0 : index
    %c0_9 = arith.constant 0 : index
    %14 = vector.load %arg5[%c0_8, %c0_9] : memref<1x128xf32, #tpu.memory_space<vmem>>, vector<1x128xf32>
    %15 = vector.broadcast %14 : vector<1x128xf32> to vector<256x128xf32>
    %16 = arith.addf %9, %15 : vector<256x128xf32>
    %c0_10 = arith.constant 0 : index
    %c0_11 = arith.constant 0 : index
    %17 = vector.load %arg6[%c0_10, %c0_11] : memref<256x128xf32, #tpu.memory_space<vmem>>, vector<256x128xf32>
    tpu.vector_store %arg6[%c0_10, %c0_11], %16 {strides = array<i32>} : memref<256x128xf32, #tpu.memory_space<vmem>>, vector<256x128xf32>,
    %c0_12 = arith.constant 0 : index
    %c0_13 = arith.constant 0 : index
    %18 = vector.load %arg6[%c0_12, %c0_13] : memref<256x128xf32, #tpu.memory_space<vmem>>, vector<256x128xf32>
    %c0_14 = arith.constant 0 : index
    %c0_15 = arith.constant 0 : index
    %19 = vector.load %arg4[%c0_14, %c0_15] : memref<128x128xf32, #tpu.memory_space<vmem>>, vector<128x128xf32>
    %cst_16 = arith.constant dense<0.000000e+00> : vector<256x128xf32>
    %20 = tpu.matmul %13, %19, %cst_16 {dimension_numbers = #tpu.dot_dimension_numbers<[1], [0], [0], [1], [0, 0, 1, 1], [], []>} : vector<256x128xf32>, vector<128x128xf32>, vector<256x128xf32> -> vector<256x128xf32>
    %21 = arith.addf %18, %20 : vector<256x128xf32>
    %c0_17 = arith.constant 0 : index
    %c0_18 = arith.constant 0 : index
    %22 = vector.load %arg6[%c0_17, %c0_18] : memref<256x128xf32, #tpu.memory_space<vmem>>, vector<256x128xf32>
    tpu.vector_store %arg6[%c0_17, %c0_18], %21 {strides = array<i32>} : memref<256x128xf32, #tpu.memory_space<vmem>>, vector<256x128xf32>,
    return
  }
  func.func @transform_0(%arg0: i32) -> (i32, i32) {
    %c0_i32 = arith.constant 0 : i32
    %c0_i32_0 = arith.constant 0 : i32
    return %arg0, %c0_i32 : i32, i32
  }
  func.func @transform_1(%arg0: i32) -> (i32, i32) {
    %c0_i32 = arith.constant 0 : i32
    %c0_i32_0 = arith.constant 0 : i32
    %c0_i32_1 = arith.constant 0 : i32
    return %c0_i32, %c0_i32_0 : i32, i32
  }
  func.func @transform_2(%arg0: i32) -> (i32, i32) {
    %c0_i32 = arith.constant 0 : i32
    %c0_i32_0 = arith.constant 0 : i32
    %c0_i32_1 = arith.constant 0 : i32
    return %c0_i32, %c0_i32_0 : i32, i32
  }
  func.func @transform_3(%arg0: i32) -> (i32, i32) {
    %c0_i32 = arith.constant 0 : i32
    %c0_i32_0 = arith.constant 0 : i32
    %c0_i32_1 = arith.constant 0 : i32
    return %c0_i32, %c0_i32_0 : i32, i32
  }
  func.func @transform_4(%arg0: i32) -> (i32, i32) {
    %c0_i32 = arith.constant 0 : i32
    %c0_i32_0 = arith.constant 0 : i32
    %c0_i32_1 = arith.constant 0 : i32
    return %c0_i32, %c0_i32_0 : i32, i32
  }
  func.func @transform_5(%arg0: i32) -> (i32, i32) {
    %c0_i32 = arith.constant 0 : i32
    %c0_i32_0 = arith.constant 0 : i32
    return %arg0, %c0_i32 : i32, i32
  }
}

</mosaic_0001>

<llo_original>
// kernel: tpu_custom_call.1
$region0: #{tpu_custom_call.1}
  #allocation0 [shape = 'u32[]', space=smem, size = 0x4, offset = 0x4, fixed_abs, tag = 'smem constant byte address 0x4 - core index']
  #allocation1 [shape = 'u32[144,128]{1,0:T(1,128)}', space=vmem, size = 0x12000, scoped, tag = 'internal scratch']
  %s0 = inlined_call_operand.vmem [shape: f32[256,24], index: 0, kind: input, shape index: {}]
  %s1 = inlined_call_operand.vmem [shape: f32[24,256], index: 1, kind: input, shape index: {}]
  %s2 = inlined_call_operand.vmem [shape: f32[128,256], index: 2, kind: input, shape index: {}]
  %s3 = inlined_call_operand.hbm [shape: f32[128,128], index: 3, kind: input, shape index: {}]
  %s4 = inlined_call_operand.vmem [shape: f32[1,128], index: 4, kind: input, shape index: {}]
  %s5 = inlined_call_operand.hbm [shape: f32[256,128], index: 5, kind: output, shape index: {}]
  %s6 = sld [smem:[#allocation0]]
  $region34: #{tpu_custom_call.1} parent=0
    _
  %s8 = ssub.s32 1, %s6
  %s9 = scalar_select 0, %s8, %s6
  $region1: #{tpu_custom_call.1} parent=0
    #allocation2 [shape = 'u8[65536]{0}', space=vmem, size = 0x10000, scoped, tag = 'input window, operand 3, single buffered']
    #allocation3 [shape = 's32[1]{0}', space=sflag, size = 0x4, scoped, tag = 'scoped memory for tpu_custom_call.1']
    #allocation4 [shape = 's32[1]{0}', space=sflag, size = 0x4, scoped, tag = 'scoped memory for tpu_custom_call.1']
    #allocation5 [shape = 'u8[131072]{0}', space=vmem, size = 0x20000, scoped, tag = 'output window, operand 0, single buffered']
    %10 = vsyncpa [#allocation3], 0
    %11 = vsyncpa [#allocation4], 0
    // Predicated region
    $region2: #{tpu_custom_call.1} parent=1 // pred_check
      _
    $region3: #{tpu_custom_call.1} parent=1 // pred_check_branch
      %13 = sbr.rel (0) target = $region5
    $region4: #{tpu_custom_call.1} parent=1 // pred_region
      _
    $region5: #{tpu_custom_call.1} parent=1 // pred_fallthru
      _
    // Predicated region
    $region6: #{tpu_custom_call.1} parent=1 // pred_check
      _
    $region7: #{tpu_custom_call.1} parent=1 // pred_check_branch
      %15 = sbr.rel (0) target = $region9
    $region8: #{tpu_custom_call.1} parent=1 // pred_region
      _
    $region9: #{tpu_custom_call.1} parent=1 // pred_fallthru
      _
    // Predicated region
    $region10: #{tpu_custom_call.1} parent=1 // pred_check
      _
    $region11: #{tpu_custom_call.1} parent=1 // pred_check_branch
      %17 = sbr.rel (0) target = $region13
    $region12: #{tpu_custom_call.1} parent=1 // pred_region
      _
    $region13: #{tpu_custom_call.1} parent=1 // pred_fallthru
      _
    // Predicated region
    $region14: #{tpu_custom_call.1} parent=1 // pred_check
      _
    $region15: #{tpu_custom_call.1} parent=1 // pred_check_branch
      %19 = sbr.rel (0) target = $region17
    $region16: #{tpu_custom_call.1} parent=1 // pred_region
      %s21 = ssub.s32 2048, 2048
      %22 = vsyncadd [#allocation3], %s21
      %s23 = sshll.u32 [#allocation2], 4
      %s24 = int_to_ptr.vmem [resolvable:$true] %s23
      %29 = dma.hbm_to_vmem [thread:$0]  %s3, 2048, %s24, [#allocation3], 128, 128, 8
    $region17: #{tpu_custom_call.1} parent=1 // pred_fallthru
      _
    // Predicated region
    $region18: #{tpu_custom_call.1} parent=1 // pred_check
      _
    $region19: #{tpu_custom_call.1} parent=1 // pred_check_branch
      %31 = sbr.rel (0) target = $region21
    $region20: #{tpu_custom_call.1} parent=1 // pred_region
      _
    $region21: #{tpu_custom_call.1} parent=1 // pred_fallthru
      _
    // Predicated region
    $region22: #{tpu_custom_call.1} parent=1 // pred_check
      _
    $region23: #{tpu_custom_call.1} parent=1 // pred_check_branch
      %33 = sbr.rel (0) target = $region25
    $region24: #{tpu_custom_call.1} parent=1 // pred_region
      %34 = dma.done [#allocation3], 2048
    $region25: #{tpu_custom_call.1} parent=1 // pred_fallthru
      _
    %v35 = vld [vmem:[%s0] sm:$0xff]
    %v36 = vld [vmem:[%s0 + $0x8] sm:$0xff]
    %v37 = vld [vmem:[%s0 + $0x10] sm:$0xff]
    %v38 = vld [vmem:[%s0 + $0x18] sm:$0xff]
    %v39 = vld [vmem:[%s0 + $0x20] sm:$0xff]
    %v40 = vld [vmem:[%s0 + $0x28] sm:$0xff]
    %v41 = vld [vmem:[%s0 + $0x30] sm:$0xff]
    %v42 = vld [vmem:[%s0 + $0x38] sm:$0xff]
    %v43 = vld [vmem:[%s0 + $0x40] sm:$0xff]
    %v44 = vld [vmem:[%s0 + $0x48] sm:$0xff]
    %v45 = vld [vmem:[%s0 + $0x50] sm:$0xff]
    %v46 = vld [vmem:[%s0 + $0x58] sm:$0xff]
    %v47 = vld [vmem:[%s0 + $0x60] sm:$0xff]
    %v48 = vld [vmem:[%s0 + $0x68] sm:$0xff]
    %v49 = vld [vmem:[%s0 + $0x70] sm:$0xff]
    %v50 = vld [vmem:[%s0 + $0x78] sm:$0xff]
    %v51 = vld [vmem:[%s0 + $0x80] sm:$0xff]
    %v52 = vld [vmem:[%s0 + $0x88] sm:$0xff]
    %v53 = vld [vmem:[%s0 + $0x90] sm:$0xff]
    %v54 = vld [vmem:[%s0 + $0x98] sm:$0xff]
    %v55 = vld [vmem:[%s0 + $0xa0] sm:$0xff]
    %v56 = vld [vmem:[%s0 + $0xa8] sm:$0xff]
    %v57 = vld [vmem:[%s0 + $0xb0] sm:$0xff]
    %v58 = vld [vmem:[%s0 + $0xb8] sm:$0xff]
    %v59 = vld [vmem:[%s0 + $0xc0] sm:$0xff]
    %v60 = vld [vmem:[%s0 + $0xc8] sm:$0xff]
    %v61 = vld [vmem:[%s0 + $0xd0] sm:$0xff]
    %v62 = vld [vmem:[%s0 + $0xd8] sm:$0xff]
    %v63 = vld [vmem:[%s0 + $0xe0] sm:$0xff]
    %v64 = vld [vmem:[%s0 + $0xe8] sm:$0xff]
    %v65 = vld [vmem:[%s0 + $0xf0] sm:$0xff]
    %v66 = vld [vmem:[%s0 + $0xf8] sm:$0xff]
    %v67 = vld [vmem:[%s1] sm:$0xff]
    %v68 = vld [vmem:[%s1 + $0x8] sm:$0xff]
    %v69 = vld [vmem:[%s1 + $0x10] sm:$0xff]
    %v70 = vld [vmem:[%s1 + $0x18] sm:$0xff]
    %v71 = vld [vmem:[%s1 + $0x20] sm:$0xff]
    %v72 = vld [vmem:[%s1 + $0x28] sm:$0xff]
    %vm73 = vcmask 195584
    %v75 = vsel %vm73, %v35, 0
    %v78 = vsel %vm73, %v36, 0
    %v81 = vsel %vm73, %v37, 0
    %v84 = vsel %vm73, %v38, 0
    %v87 = vsel %vm73, %v39, 0
    %v90 = vsel %vm73, %v40, 0
    %v93 = vsel %vm73, %v41, 0
    %v96 = vsel %vm73, %v42, 0
    %v99 = vsel %vm73, %v43, 0
    %v102 = vsel %vm73, %v44, 0
    %v105 = vsel %vm73, %v45, 0
    %v108 = vsel %vm73, %v46, 0
    %v111 = vsel %vm73, %v47, 0
    %v114 = vsel %vm73, %v48, 0
    %v117 = vsel %vm73, %v49, 0
    %v120 = vsel %vm73, %v50, 0
    %v123 = vsel %vm73, %v51, 0
    %v126 = vsel %vm73, %v52, 0
    %v129 = vsel %vm73, %v53, 0
    %v132 = vsel %vm73, %v54, 0
    %v135 = vsel %vm73, %v55, 0
    %v138 = vsel %vm73, %v56, 0
    %v141 = vsel %vm73, %v57, 0
    %v144 = vsel %vm73, %v58, 0
    %v147 = vsel %vm73, %v59, 0
    %v150 = vsel %vm73, %v60, 0
    %v153 = vsel %vm73, %v61, 0
    %v156 = vsel %vm73, %v62, 0
    %v159 = vsel %vm73, %v63, 0
    %v162 = vsel %vm73, %v64, 0
    %v165 = vsel %vm73, %v65, 0
    %v168 = vsel %vm73, %v66, 0
    %170 = vmatprep.subr.mxu0 0.0
    %171 = vmatpush1.msra.mxu0 0.0
    %172 = vmatprep.subr.mxu0 0.0
    %173 = vmatpush1.msra.mxu0 0.0
    %174 = vmatprep.subr.mxu0 0.0
    %175 = vmatpush1.msra.mxu0 0.0
    %176 = vmatprep.subr.mxu0 0.0
    %177 = vmatpush1.msra.mxu0 0.0
    %178 = vmatprep.subr.mxu0 0.0
    %179 = vmatpush1.msra.mxu0 0.0
    %180 = vmatprep.subr.mxu0 0.0
    %181 = vmatpush1.msra.mxu0 0.0
    %182 = vmatprep.subr.mxu0 0.0
    %183 = vmatpush1.msra.mxu0 0.0
    %184 = vmatprep.subr.mxu0 0.0
    %185 = vmatpush1.msra.mxu0 0.0
    %186 = vmatprep.subr.mxu0 0.0
    %187 = vmatpush1.msra.mxu0 0.0
    %188 = vmatprep.subr.mxu0 0.0
    %189 = vmatpush1.msra.mxu0 0.0
    %190 = vmatprep.subr.mxu0 0.0
    %191 = vmatpush1.msra.mxu0 0.0
    %192 = vmatprep.subr.mxu0 0.0
    %193 = vmatpush1.msra.mxu0 0.0
    %194 = vmatprep.subr.mxu0 0.0
    %195 = vmatpush1.msra.mxu0 0.0
    %196 = vmatprep.subr.mxu0 %v72
    %197 = vmatpush1.msra.mxu0 %v71
    %198 = vmatprep.subr.mxu0 %v70
    %199 = vmatpush1.msra.mxu0 %v69
    %200 = vmatprep.subr.mxu0 %v68
    %201 = vmatpush1.msra.mxu0 %v67
    %202 = vmatprep.subr.mxu0 0.0
    %203 = vmatpush2.msra.mxu0 0.0
    %204 = vmatprep.subr.mxu0 0.0
    %205 = vmatpush2.msra.mxu0 0.0
    %206 = vmatprep.subr.mxu0 0.0
    %207 = vmatpush2.msra.mxu0 0.0
    %208 = vmatprep.subr.mxu0 0.0
    %209 = vmatpush2.msra.mxu0 0.0
    %210 = vmatprep.subr.mxu0 0.0
    %211 = vmatpush2.msra.mxu0 0.0
    %212 = vmatprep.subr.mxu0 0.0
    %213 = vmatpush2.msra.mxu0 0.0
    %214 = vmatprep.subr.mxu0 0.0
    %215 = vmatpush2.msra.mxu0 0.0
    %216 = vmatprep.subr.mxu0 0.0
    %217 = vmatpush2.msra.mxu0 0.0
    %218 = vmatprep.subr.mxu0 0.0
    %219 = vmatpush2.msra.mxu0 0.0
    %220 = vmatprep.subr.mxu0 0.0
    %221 = vmatpush2.msra.mxu0 0.0
    %222 = vmatprep.subr.mxu0 0.0
    %223 = vmatpush2.msra.mxu0 0.0
    %224 = vmatprep.subr.mxu0 0.0
    %225 = vmatpush2.msra.mxu0 0.0
    %226 = vmatprep.subr.mxu0 0.0
    %227 = vmatpush2.msra.mxu0 0.0
    %228 = vmatprep.subr.mxu0 0.0
    %229 = vmatpush2.msra.mxu0 0.0
    %230 = vmatprep.subr.mxu0 0.0
    %231 = vmatpush2.msra.mxu0 0.0
    %232 = vmatprep.subr.mxu0 0.0
    %233 = vmatpush2.msra.mxu0 0.0
    %234 = vmatprep.mubr.f32.mxu0 0.0
    %235 = vmatmul.mubr.f32.gmra.mxu0 %v75
    %v236 = vpop.f32.mrf.mxu0
    %v237 = vadd.f32 0.0, %v236
    %v238 = vpop.f32.mrf.mxu0
    %v239 = vadd.f32 0.0, %v238
    %240 = vmatprep.mubr.f32.mxu0 0.0
    %241 = vmatmul.mubr.f32.gmra.mxu0 %v78
    %v242 = vpop.f32.mrf.mxu0
    %v243 = vadd.f32 0.0, %v242
    %v244 = vpop.f32.mrf.mxu0
    %v245 = vadd.f32 0.0, %v244
    %246 = vmatprep.mubr.f32.mxu0 0.0
    %247 = vmatmul.mubr.f32.gmra.mxu0 %v81
    %v248 = vpop.f32.mrf.mxu0
    %v249 = vadd.f32 0.0, %v248
    %v250 = vpop.f32.mrf.mxu0
    %v251 = vadd.f32 0.0, %v250
    %252 = vmatprep.mubr.f32.mxu0 0.0
    %253 = vmatmul.mubr.f32.gmra.mxu0 %v84
    %v254 = vpop.f32.mrf.mxu0
    %v255 = vadd.f32 0.0, %v254
    %v256 = vpop.f32.mrf.mxu0
    %v257 = vadd.f32 0.0, %v256
    %258 = vmatprep.mubr.f32.mxu0 0.0
    %259 = vmatmul.mubr.f32.gmra.mxu0 %v87
    %v260 = vpop.f32.mrf.mxu0
    %v261 = vadd.f32 0.0, %v260
    %v262 = vpop.f32.mrf.mxu0
    %v263 = vadd.f32 0.0, %v262
    %264 = vmatprep.mubr.f32.mxu0 0.0
    %265 = vmatmul.mubr.f32.gmra.mxu0 %v90
    %v266 = vpop.f32.mrf.mxu0
    %v267 = vadd.f32 0.0, %v266
    %v268 = vpop.f32.mrf.mxu0
    %v269 = vadd.f32 0.0, %v268
    %270 = vmatprep.mubr.f32.mxu0 0.0
    %271 = vmatmul.mubr.f32.gmra.mxu0 %v93
    %v272 = vpop.f32.mrf.mxu0
    %v273 = vadd.f32 0.0, %v272
    %v274 = vpop.f32.mrf.mxu0
    %v275 = vadd.f32 0.0, %v274
    %276 = vmatprep.mubr.f32.mxu0 0.0
    %277 = vmatmul.mubr.f32.gmra.mxu0 %v96
    %v278 = vpop.f32.mrf.mxu0
    %v279 = vadd.f32 0.0, %v278
    %v280 = vpop.f32.mrf.mxu0
    %v281 = vadd.f32 0.0, %v280
    %282 = vmatprep.mubr.f32.mxu0 0.0
    %283 = vmatmul.mubr.f32.gmra.mxu0 %v99
    %v284 = vpop.f32.mrf.mxu0
    %v285 = vadd.f32 0.0, %v284
    %v286 = vpop.f32.mrf.mxu0
    %v287 = vadd.f32 0.0, %v286
    %288 = vmatprep.mubr.f32.mxu0 0.0
    %289 = vmatmul.mubr.f32.gmra.mxu0 %v102
    %v290 = vpop.f32.mrf.mxu0
    %v291 = vadd.f32 0.0, %v290
    %v292 = vpop.f32.mrf.mxu0
    %v293 = vadd.f32 0.0, %v292
    %294 = vmatprep.mubr.f32.mxu0 0.0
    %295 = vmatmul.mubr.f32.gmra.mxu0 %v105
    %v296 = vpop.f32.mrf.mxu0
    %v297 = vadd.f32 0.0, %v296
    %v298 = vpop.f32.mrf.mxu0
    %v299 = vadd.f32 0.0, %v298
    %300 = vmatprep.mubr.f32.mxu0 0.0
    %301 = vmatmul.mubr.f32.gmra.mxu0 %v108
    %v302 = vpop.f32.mrf.mxu0
    %v303 = vadd.f32 0.0, %v302
    %v304 = vpop.f32.mrf.mxu0
    %v305 = vadd.f32 0.0, %v304
    %306 = vmatprep.mubr.f32.mxu0 0.0
    %307 = vmatmul.mubr.f32.gmra.mxu0 %v111
    %v308 = vpop.f32.mrf.mxu0
    %v309 = vadd.f32 0.0, %v308
    %v310 = vpop.f32.mrf.mxu0
    %v311 = vadd.f32 0.0, %v310
    %312 = vmatprep.mubr.f32.mxu0 0.0
    %313 = vmatmul.mubr.f32.gmra.mxu0 %v114
    %v314 = vpop.f32.mrf.mxu0
    %v315 = vadd.f32 0.0, %v314
    %v316 = vpop.f32.mrf.mxu0
    %v317 = vadd.f32 0.0, %v316
    %318 = vmatprep.mubr.f32.mxu0 0.0
    %319 = vmatmul.mubr.f32.gmra.mxu0 %v117
    %v320 = vpop.f32.mrf.mxu0
    %v321 = vadd.f32 0.0, %v320
    %v322 = vpop.f32.mrf.mxu0
    %v323 = vadd.f32 0.0, %v322
    %324 = vmatprep.mubr.f32.mxu0 0.0
    %325 = vmatmul.mubr.f32.gmra.mxu0 %v120
    %v326 = vpop.f32.mrf.mxu0
    %v327 = vadd.f32 0.0, %v326
    %v328 = vpop.f32.mrf.mxu0
    %v329 = vadd.f32 0.0, %v328
    %330 = vmatprep.mubr.f32.mxu0 0.0
    %331 = vmatmul.mubr.f32.gmra.mxu0 %v123
    %v332 = vpop.f32.mrf.mxu0
    %v333 = vadd.f32 0.0, %v332
    %v334 = vpop.f32.mrf.mxu0
    %v335 = vadd.f32 0.0, %v334
    %336 = vmatprep.mubr.f32.mxu0 0.0
    %337 = vmatmul.mubr.f32.gmra.mxu0 %v126
    %v338 = vpop.f32.mrf.mxu0
    %v339 = vadd.f32 0.0, %v338
    %v340 = vpop.f32.mrf.mxu0
    %v341 = vadd.f32 0.0, %v340
    %342 = vmatprep.mubr.f32.mxu0 0.0
    %343 = vmatmul.mubr.f32.gmra.mxu0 %v129
    %v344 = vpop.f32.mrf.mxu0
    %v345 = vadd.f32 0.0, %v344
    %v346 = vpop.f32.mrf.mxu0
    %v347 = vadd.f32 0.0, %v346
    %348 = vmatprep.mubr.f32.mxu0 0.0
    %349 = vmatmul.mubr.f32.gmra.mxu0 %v132
    %v350 = vpop.f32.mrf.mxu0
    %v351 = vadd.f32 0.0, %v350
    %v352 = vpop.f32.mrf.mxu0
    %v353 = vadd.f32 0.0, %v352
    %354 = vmatprep.mubr.f32.mxu0 0.0
    %355 = vmatmul.mubr.f32.gmra.mxu0 %v135
    %v356 = vpop.f32.mrf.mxu0
    %v357 = vadd.f32 0.0, %v356
    %v358 = vpop.f32.mrf.mxu0
    %v359 = vadd.f32 0.0, %v358
    %360 = vmatprep.mubr.f32.mxu0 0.0
    %361 = vmatmul.mubr.f32.gmra.mxu0 %v138
    %v362 = vpop.f32.mrf.mxu0
    %v363 = vadd.f32 0.0, %v362
    %v364 = vpop.f32.mrf.mxu0
    %v365 = vadd.f32 0.0, %v364
    %366 = vmatprep.mubr.f32.mxu0 0.0
    %367 = vmatmul.mubr.f32.gmra.mxu0 %v141
    %v368 = vpop.f32.mrf.mxu0
    %v369 = vadd.f32 0.0, %v368
    %v370 = vpop.f32.mrf.mxu0
    %v371 = vadd.f32 0.0, %v370
    %372 = vmatprep.mubr.f32.mxu0 0.0
    %373 = vmatmul.mubr.f32.gmra.mxu0 %v144
    %v374 = vpop.f32.mrf.mxu0
    %v375 = vadd.f32 0.0, %v374
    %v376 = vpop.f32.mrf.mxu0
    %v377 = vadd.f32 0.0, %v376
    %378 = vmatprep.mubr.f32.mxu0 0.0
    %379 = vmatmul.mubr.f32.gmra.mxu0 %v147
    %v380 = vpop.f32.mrf.mxu0
    %v381 = vadd.f32 0.0, %v380
    %v382 = vpop.f32.mrf.mxu0
    %v383 = vadd.f32 0.0, %v382
    %384 = vmatprep.mubr.f32.mxu0 0.0
    %385 = vmatmul.mubr.f32.gmra.mxu0 %v150
    %v386 = vpop.f32.mrf.mxu0
    %v387 = vadd.f32 0.0, %v386
    %v388 = vpop.f32.mrf.mxu0
    %v389 = vadd.f32 0.0, %v388
    %390 = vmatprep.mubr.f32.mxu0 0.0
    %391 = vmatmul.mubr.f32.gmra.mxu0 %v153
    %v392 = vpop.f32.mrf.mxu0
    %v393 = vadd.f32 0.0, %v392
    %v394 = vpop.f32.mrf.mxu0
    %v395 = vadd.f32 0.0, %v394
    %396 = vmatprep.mubr.f32.mxu0 0.0
    %397 = vmatmul.mubr.f32.gmra.mxu0 %v156
    %v398 = vpop.f32.mrf.mxu0
    %v399 = vadd.f32 0.0, %v398
    %v400 = vpop.f32.mrf.mxu0
    %v401 = vadd.f32 0.0, %v400
    %402 = vmatprep.mubr.f32.mxu0 0.0
    %403 = vmatmul.mubr.f32.gmra.mxu0 %v159
    %v404 = vpop.f32.mrf.mxu0
    %v405 = vadd.f32 0.0, %v404
    %v406 = vpop.f32.mrf.mxu0
    %v407 = vadd.f32 0.0, %v406
    %408 = vmatprep.mubr.f32.mxu0 0.0
    %409 = vmatmul.mubr.f32.gmra.mxu0 %v162
    %v410 = vpop.f32.mrf.mxu0
    %v411 = vadd.f32 0.0, %v410
    %v412 = vpop.f32.mrf.mxu0
    %v413 = vadd.f32 0.0, %v412
    %414 = vmatprep.mubr.f32.mxu0 0.0
    %415 = vmatmul.mubr.f32.gmra.mxu0 %v165
    %v416 = vpop.f32.mrf.mxu0
    %v417 = vadd.f32 0.0, %v416
    %v418 = vpop.f32.mrf.mxu0
    %v419 = vadd.f32 0.0, %v418
    %420 = vmatprep.mubr.f32.mxu0 0.0
    %421 = vmatmul.mubr.f32.gmra.mxu0 %v168
    %v422 = vpop.f32.mrf.mxu0
    %v423 = vadd.f32 0.0, %v422
    %v424 = vpop.f32.mrf.mxu0
    %v425 = vadd.f32 0.0, %v424
    %426 = vdwg.mxu0
    %v427 = vmax.f32 %v237, 0.0
    %v428 = vmax.f32 %v243, 0.0
    %v429 = vmax.f32 %v249, 0.0
    %v430 = vmax.f32 %v255, 0.0
    %v431 = vmax.f32 %v261, 0.0
    %v432 = vmax.f32 %v267, 0.0
    %v433 = vmax.f32 %v273, 0.0
    %v434 = vmax.f32 %v279, 0.0
    %v435 = vmax.f32 %v285, 0.0
    %v436 = vmax.f32 %v291, 0.0
    %v437 = vmax.f32 %v297, 0.0
    %v438 = vmax.f32 %v303, 0.0
    %v439 = vmax.f32 %v309, 0.0
    %v440 = vmax.f32 %v315, 0.0
    %v441 = vmax.f32 %v321, 0.0
    %v442 = vmax.f32 %v327, 0.0
    %v443 = vmax.f32 %v333, 0.0
    %v444 = vmax.f32 %v339, 0.0
    %v445 = vmax.f32 %v345, 0.0
    %v446 = vmax.f32 %v351, 0.0
    %v447 = vmax.f32 %v357, 0.0
    %v448 = vmax.f32 %v363, 0.0
    %v449 = vmax.f32 %v369, 0.0
    %v450 = vmax.f32 %v375, 0.0
    %v451 = vmax.f32 %v381, 0.0
    %v452 = vmax.f32 %v387, 0.0
    %v453 = vmax.f32 %v393, 0.0
    %v454 = vmax.f32 %v399, 0.0
    %v455 = vmax.f32 %v405, 0.0
    %v456 = vmax.f32 %v411, 0.0
    %v457 = vmax.f32 %v417, 0.0
    %v458 = vmax.f32 %v423, 0.0
    %v459 = vld [vmem:[%s2] sm:$0xff]
    %v460 = vld [vmem:[%s2 + $0x8] sm:$0xff]
    %v461 = vld [vmem:[%s2 + $0x10] sm:$0xff]
    %v462 = vld [vmem:[%s2 + $0x18] sm:$0xff]
    %v463 = vld [vmem:[%s2 + $0x20] sm:$0xff]
    %v464 = vld [vmem:[%s2 + $0x28] sm:$0xff]
    %v465 = vld [vmem:[%s2 + $0x30] sm:$0xff]
    %v466 = vld [vmem:[%s2 + $0x38] sm:$0xff]
    %v467 = vld [vmem:[%s2 + $0x40] sm:$0xff]
    %v468 = vld [vmem:[%s2 + $0x48] sm:$0xff]
    %v469 = vld [vmem:[%s2 + $0x50] sm:$0xff]
    %v470 = vld [vmem:[%s2 + $0x58] sm:$0xff]
    %v471 = vld [vmem:[%s2 + $0x60] sm:$0xff]
    %v472 = vld [vmem:[%s2 + $0x68] sm:$0xff]
    %v473 = vld [vmem:[%s2 + $0x70] sm:$0xff]
    %v474 = vld [vmem:[%s2 + $0x78] sm:$0xff]
    %v475 = vld [vmem:[%s2 + $0x80] sm:$0xff]
    %v476 = vld [vmem:[%s2 + $0x88] sm:$0xff]
    %v477 = vld [vmem:[%s2 + $0x90] sm:$0xff]
    %v478 = vld [vmem:[%s2 + $0x98] sm:$0xff]
    %v479 = vld [vmem:[%s2 + $0xa0] sm:$0xff]
    %v480 = vld [vmem:[%s2 + $0xa8] sm:$0xff]
    %v481 = vld [vmem:[%s2 + $0xb0] sm:$0xff]
    %v482 = vld [vmem:[%s2 + $0xb8] sm:$0xff]
    %v483 = vld [vmem:[%s2 + $0xc0] sm:$0xff]
    %v484 = vld [vmem:[%s2 + $0xc8] sm:$0xff]
    %v485 = vld [vmem:[%s2 + $0xd0] sm:$0xff]
    %v486 = vld [vmem:[%s2 + $0xd8] sm:$0xff]
    %v487 = vld [vmem:[%s2 + $0xe0] sm:$0xff]
    %v488 = vld [vmem:[%s2 + $0xe8] sm:$0xff]
    %v489 = vld [vmem:[%s2 + $0xf0] sm:$0xff]
    %v490 = vld [vmem:[%s2 + $0xf8] sm:$0xff]
    %491 = vmatprep.subr.mxu0 %v490
    %492 = vmatpush1.msra.mxu0 %v489
    %493 = vmatprep.subr.mxu0 %v488
    %494 = vmatpush1.msra.mxu0 %v487
    %495 = vmatprep.subr.mxu0 %v486
    %496 = vmatpush1.msra.mxu0 %v485
    %497 = vmatprep.subr.mxu0 %v484
    %498 = vmatpush1.msra.mxu0 %v483
    %499 = vmatprep.subr.mxu0 %v482
    %500 = vmatpush1.msra.mxu0 %v481
    %501 = vmatprep.subr.mxu0 %v480
    %502 = vmatpush1.msra.mxu0 %v479
    %503 = vmatprep.subr.mxu0 %v478
    %504 = vmatpush1.msra.mxu0 %v477
    %505 = vmatprep.subr.mxu0 %v476
    %506 = vmatpush1.msra.mxu0 %v475
    %507 = vmatprep.subr.mxu0 %v474
    %508 = vmatpush1.msra.mxu0 %v473
    %509 = vmatprep.subr.mxu0 %v472
    %510 = vmatpush1.msra.mxu0 %v471
    %511 = vmatprep.subr.mxu0 %v470
    %512 = vmatpush1.msra.mxu0 %v469
    %513 = vmatprep.subr.mxu0 %v468
    %514 = vmatpush1.msra.mxu0 %v467
    %515 = vmatprep.subr.mxu0 %v466
    %516 = vmatpush1.msra.mxu0 %v465
    %517 = vmatprep.subr.mxu0 %v464
    %518 = vmatpush1.msra.mxu0 %v463
    %519 = vmatprep.subr.mxu0 %v462
    %520 = vmatpush1.msra.mxu0 %v461
    %521 = vmatprep.subr.mxu0 %v460
    %522 = vmatpush1.msra.mxu0 %v459
    %523 = vmatprep.subr.mxu0 0.0
    %524 = vmatpush2.msra.mxu0 0.0
    %525 = vmatprep.subr.mxu0 0.0
    %526 = vmatpush2.msra.mxu0 0.0
    %527 = vmatprep.subr.mxu0 0.0
    %528 = vmatpush2.msra.mxu0 0.0
    %529 = vmatprep.subr.mxu0 0.0
    %530 = vmatpush2.msra.mxu0 0.0
    %531 = vmatprep.subr.mxu0 0.0
    %532 = vmatpush2.msra.mxu0 0.0
    %533 = vmatprep.subr.mxu0 0.0
    %534 = vmatpush2.msra.mxu0 0.0
    %535 = vmatprep.subr.mxu0 0.0
    %536 = vmatpush2.msra.mxu0 0.0
    %537 = vmatprep.subr.mxu0 0.0
    %538 = vmatpush2.msra.mxu0 0.0
    %539 = vmatprep.subr.mxu0 0.0
    %540 = vmatpush2.msra.mxu0 0.0
    %541 = vmatprep.subr.mxu0 0.0
    %542 = vmatpush2.msra.mxu0 0.0
    %543 = vmatprep.subr.mxu0 0.0
    %544 = vmatpush2.msra.mxu0 0.0
    %545 = vmatprep.subr.mxu0 0.0
    %546 = vmatpush2.msra.mxu0 0.0
    %547 = vmatprep.subr.mxu0 0.0
    %548 = vmatpush2.msra.mxu0 0.0
    %549 = vmatprep.subr.mxu0 0.0
    %550 = vmatpush2.msra.mxu0 0.0
    %551 = vmatprep.subr.mxu0 0.0
    %552 = vmatpush2.msra.mxu0 0.0
    %553 = vmatprep.subr.mxu0 0.0
    %554 = vmatpush2.msra.mxu0 0.0
    %555 = vmatprep.mubr.f32.mxu0 0.0
    %556 = vmatmul.mubr.f32.gmra.mxu0 %v427
    %v557 = vpop.f32.mrf.mxu0
    %v558 = vadd.f32 0.0, %v557
    %v559 = vpop.f32.mrf.mxu0
    %v560 = vadd.f32 0.0, %v559
    %561 = vmatprep.mubr.f32.mxu0 0.0
    %562 = vmatmul.mubr.f32.gmra.mxu0 %v428
    %v563 = vpop.f32.mrf.mxu0
    %v564 = vadd.f32 0.0, %v563
    %v565 = vpop.f32.mrf.mxu0
    %v566 = vadd.f32 0.0, %v565
    %567 = vmatprep.mubr.f32.mxu0 0.0
    %568 = vmatmul.mubr.f32.gmra.mxu0 %v429
    %v569 = vpop.f32.mrf.mxu0
    %v570 = vadd.f32 0.0, %v569
    %v571 = vpop.f32.mrf.mxu0
    %v572 = vadd.f32 0.0, %v571
    %573 = vmatprep.mubr.f32.mxu0 0.0
    %574 = vmatmul.mubr.f32.gmra.mxu0 %v430
    %v575 = vpop.f32.mrf.mxu0
    %v576 = vadd.f32 0.0, %v575
    %v577 = vpop.f32.mrf.mxu0
    %v578 = vadd.f32 0.0, %v577
    %579 = vmatprep.mubr.f32.mxu0 0.0
    %580 = vmatmul.mubr.f32.gmra.mxu0 %v431
    %v581 = vpop.f32.mrf.mxu0
    %v582 = vadd.f32 0.0, %v581
    %v583 = vpop.f32.mrf.mxu0
    %v584 = vadd.f32 0.0, %v583
    %585 = vmatprep.mubr.f32.mxu0 0.0
    %586 = vmatmul.mubr.f32.gmra.mxu0 %v432
    %v587 = vpop.f32.mrf.mxu0
    %v588 = vadd.f32 0.0, %v587
    %v589 = vpop.f32.mrf.mxu0
    %v590 = vadd.f32 0.0, %v589
    %591 = vmatprep.mubr.f32.mxu0 0.0
    %592 = vmatmul.mubr.f32.gmra.mxu0 %v433
    %v593 = vpop.f32.mrf.mxu0
    %v594 = vadd.f32 0.0, %v593
    %v595 = vpop.f32.mrf.mxu0
    %v596 = vadd.f32 0.0, %v595
    %597 = vmatprep.mubr.f32.mxu0 0.0
    %598 = vmatmul.mubr.f32.gmra.mxu0 %v434
    %v599 = vpop.f32.mrf.mxu0
    %v600 = vadd.f32 0.0, %v599
    %v601 = vpop.f32.mrf.mxu0
    %v602 = vadd.f32 0.0, %v601
    %603 = vmatprep.mubr.f32.mxu0 0.0
    %604 = vmatmul.mubr.f32.gmra.mxu0 %v435
    %v605 = vpop.f32.mrf.mxu0
    %v606 = vadd.f32 0.0, %v605
    %v607 = vpop.f32.mrf.mxu0
    %v608 = vadd.f32 0.0, %v607
    %609 = vmatprep.mubr.f32.mxu0 0.0
    %610 = vmatmul.mubr.f32.gmra.mxu0 %v436
    %v611 = vpop.f32.mrf.mxu0
    %v612 = vadd.f32 0.0, %v611
    %v613 = vpop.f32.mrf.mxu0
    %v614 = vadd.f32 0.0, %v613
    %615 = vmatprep.mubr.f32.mxu0 0.0
    %616 = vmatmul.mubr.f32.gmra.mxu0 %v437
    %v617 = vpop.f32.mrf.mxu0
    %v618 = vadd.f32 0.0, %v617
    %v619 = vpop.f32.mrf.mxu0
    %v620 = vadd.f32 0.0, %v619
    %621 = vmatprep.mubr.f32.mxu0 0.0
    %622 = vmatmul.mubr.f32.gmra.mxu0 %v438
    %v623 = vpop.f32.mrf.mxu0
    %v624 = vadd.f32 0.0, %v623
    %v625 = vpop.f32.mrf.mxu0
    %v626 = vadd.f32 0.0, %v625
    %627 = vmatprep.mubr.f32.mxu0 0.0
    %628 = vmatmul.mubr.f32.gmra.mxu0 %v439
    %v629 = vpop.f32.mrf.mxu0
    %v630 = vadd.f32 0.0, %v629
    %v631 = vpop.f32.mrf.mxu0
    %v632 = vadd.f32 0.0, %v631
    %633 = vmatprep.mubr.f32.mxu0 0.0
    %634 = vmatmul.mubr.f32.gmra.mxu0 %v440
    %v635 = vpop.f32.mrf.mxu0
    %v636 = vadd.f32 0.0, %v635
    %v637 = vpop.f32.mrf.mxu0
    %v638 = vadd.f32 0.0, %v637
    %639 = vmatprep.mubr.f32.mxu0 0.0
    %640 = vmatmul.mubr.f32.gmra.mxu0 %v441
    %v641 = vpop.f32.mrf.mxu0
    %v642 = vadd.f32 0.0, %v641
    %v643 = vpop.f32.mrf.mxu0
    %v644 = vadd.f32 0.0, %v643
    %645 = vmatprep.mubr.f32.mxu0 0.0
    %646 = vmatmul.mubr.f32.gmra.mxu0 %v442
    %v647 = vpop.f32.mrf.mxu0
    %v648 = vadd.f32 0.0, %v647
    %v649 = vpop.f32.mrf.mxu0
    %v650 = vadd.f32 0.0, %v649
    %651 = vmatprep.mubr.f32.mxu0 0.0
    %652 = vmatmul.mubr.f32.gmra.mxu0 %v443
    %v653 = vpop.f32.mrf.mxu0
    %v654 = vadd.f32 0.0, %v653
    %v655 = vpop.f32.mrf.mxu0
    %v656 = vadd.f32 0.0, %v655
    %657 = vmatprep.mubr.f32.mxu0 0.0
    %658 = vmatmul.mubr.f32.gmra.mxu0 %v444
    %v659 = vpop.f32.mrf.mxu0
    %v660 = vadd.f32 0.0, %v659
    %v661 = vpop.f32.mrf.mxu0
    %v662 = vadd.f32 0.0, %v661
    %663 = vmatprep.mubr.f32.mxu0 0.0
    %664 = vmatmul.mubr.f32.gmra.mxu0 %v445
    %v665 = vpop.f32.mrf.mxu0
    %v666 = vadd.f32 0.0, %v665
    %v667 = vpop.f32.mrf.mxu0
    %v668 = vadd.f32 0.0, %v667
    %669 = vmatprep.mubr.f32.mxu0 0.0
    %670 = vmatmul.mubr.f32.gmra.mxu0 %v446
    %v671 = vpop.f32.mrf.mxu0
    %v672 = vadd.f32 0.0, %v671
    %v673 = vpop.f32.mrf.mxu0
    %v674 = vadd.f32 0.0, %v673
    %675 = vmatprep.mubr.f32.mxu0 0.0
    %676 = vmatmul.mubr.f32.gmra.mxu0 %v447
    %v677 = vpop.f32.mrf.mxu0
    %v678 = vadd.f32 0.0, %v677
    %v679 = vpop.f32.mrf.mxu0
    %v680 = vadd.f32 0.0, %v679
    %681 = vmatprep.mubr.f32.mxu0 0.0
    %682 = vmatmul.mubr.f32.gmra.mxu0 %v448
    %v683 = vpop.f32.mrf.mxu0
    %v684 = vadd.f32 0.0, %v683
    %v685 = vpop.f32.mrf.mxu0
    %v686 = vadd.f32 0.0, %v685
    %687 = vmatprep.mubr.f32.mxu0 0.0
    %688 = vmatmul.mubr.f32.gmra.mxu0 %v449
    %v689 = vpop.f32.mrf.mxu0
    %v690 = vadd.f32 0.0, %v689
    %v691 = vpop.f32.mrf.mxu0
    %v692 = vadd.f32 0.0, %v691
    %693 = vmatprep.mubr.f32.mxu0 0.0
    %694 = vmatmul.mubr.f32.gmra.mxu0 %v450
    %v695 = vpop.f32.mrf.mxu0
    %v696 = vadd.f32 0.0, %v695
    %v697 = vpop.f32.mrf.mxu0
    %v698 = vadd.f32 0.0, %v697
    %699 = vmatprep.mubr.f32.mxu0 0.0
    %700 = vmatmul.mubr.f32.gmra.mxu0 %v451
    %v701 = vpop.f32.mrf.mxu0
    %v702 = vadd.f32 0.0, %v701
    %v703 = vpop.f32.mrf.mxu0
    %v704 = vadd.f32 0.0, %v703
    %705 = vmatprep.mubr.f32.mxu0 0.0
    %706 = vmatmul.mubr.f32.gmra.mxu0 %v452
    %v707 = vpop.f32.mrf.mxu0
    %v708 = vadd.f32 0.0, %v707
    %v709 = vpop.f32.mrf.mxu0
    %v710 = vadd.f32 0.0, %v709
    %711 = vmatprep.mubr.f32.mxu0 0.0
    %712 = vmatmul.mubr.f32.gmra.mxu0 %v453
    %v713 = vpop.f32.mrf.mxu0
    %v714 = vadd.f32 0.0, %v713
    %v715 = vpop.f32.mrf.mxu0
    %v716 = vadd.f32 0.0, %v715
    %717 = vmatprep.mubr.f32.mxu0 0.0
    %718 = vmatmul.mubr.f32.gmra.mxu0 %v454
    %v719 = vpop.f32.mrf.mxu0
    %v720 = vadd.f32 0.0, %v719
    %v721 = vpop.f32.mrf.mxu0
    %v722 = vadd.f32 0.0, %v721
    %723 = vmatprep.mubr.f32.mxu0 0.0
    %724 = vmatmul.mubr.f32.gmra.mxu0 %v455
    %v725 = vpop.f32.mrf.mxu0
    %v726 = vadd.f32 0.0, %v725
    %v727 = vpop.f32.mrf.mxu0
    %v728 = vadd.f32 0.0, %v727
    %729 = vmatprep.mubr.f32.mxu0 0.0
    %730 = vmatmul.mubr.f32.gmra.mxu0 %v456
    %v731 = vpop.f32.mrf.mxu0
    %v732 = vadd.f32 0.0, %v731
    %v733 = vpop.f32.mrf.mxu0
    %v734 = vadd.f32 0.0, %v733
    %735 = vmatprep.mubr.f32.mxu0 0.0
    %736 = vmatmul.mubr.f32.gmra.mxu0 %v457
    %v737 = vpop.f32.mrf.mxu0
    %v738 = vadd.f32 0.0, %v737
    %v739 = vpop.f32.mrf.mxu0
    %v740 = vadd.f32 0.0, %v739
    %741 = vmatprep.mubr.f32.mxu0 0.0
    %742 = vmatmul.mubr.f32.gmra.mxu0 %v458
    %v743 = vpop.f32.mrf.mxu0
    %v744 = vadd.f32 0.0, %v743
    %v745 = vpop.f32.mrf.mxu0
    %v746 = vadd.f32 0.0, %v745
    %747 = vdwg.mxu0
    %v748 = vadd.f32 %v560, %v239
    %v749 = vadd.f32 %v566, %v245
    %v750 = vadd.f32 %v572, %v251
    %v751 = vadd.f32 %v578, %v257
    %v752 = vadd.f32 %v584, %v263
    %v753 = vadd.f32 %v590, %v269
    %v754 = vadd.f32 %v596, %v275
    %v755 = vadd.f32 %v602, %v281
    %v756 = vadd.f32 %v608, %v287
    %v757 = vadd.f32 %v614, %v293
    %v758 = vadd.f32 %v620, %v299
    %v759 = vadd.f32 %v626, %v305
    %v760 = vadd.f32 %v632, %v311
    %v761 = vadd.f32 %v638, %v317
    %v762 = vadd.f32 %v644, %v323
    %v763 = vadd.f32 %v650, %v329
    %v764 = vadd.f32 %v656, %v335
    %v765 = vadd.f32 %v662, %v341
    %v766 = vadd.f32 %v668, %v347
    %v767 = vadd.f32 %v674, %v353
    %v768 = vadd.f32 %v680, %v359
    %v769 = vadd.f32 %v686, %v365
    %v770 = vadd.f32 %v692, %v371
    %v771 = vadd.f32 %v698, %v377
    %v772 = vadd.f32 %v704, %v383
    %v773 = vadd.f32 %v710, %v389
    %v774 = vadd.f32 %v716, %v395
    %v775 = vadd.f32 %v722, %v401
    %v776 = vadd.f32 %v728, %v407
    %v777 = vadd.f32 %v734, %v413
    %v778 = vadd.f32 %v740, %v419
    %v779 = vadd.f32 %v746, %v425
    %v780 = vmax.f32 %v748, 0.0
    %v781 = vmax.f32 %v749, 0.0
    %v782 = vmax.f32 %v750, 0.0
    %v783 = vmax.f32 %v751, 0.0
    %v784 = vmax.f32 %v752, 0.0
    %v785 = vmax.f32 %v753, 0.0
    %v786 = vmax.f32 %v754, 0.0
    %v787 = vmax.f32 %v755, 0.0
    %v788 = vmax.f32 %v756, 0.0
    %v789 = vmax.f32 %v757, 0.0
    %v790 = vmax.f32 %v758, 0.0
    %v791 = vmax.f32 %v759, 0.0
    %v792 = vmax.f32 %v760, 0.0
    %v793 = vmax.f32 %v761, 0.0
    %v794 = vmax.f32 %v762, 0.0
    %v795 = vmax.f32 %v763, 0.0
    %v796 = vmax.f32 %v764, 0.0
    %v797 = vmax.f32 %v765, 0.0
    %v798 = vmax.f32 %v766, 0.0
    %v799 = vmax.f32 %v767, 0.0
    %v800 = vmax.f32 %v768, 0.0
    %v801 = vmax.f32 %v769, 0.0
    %v802 = vmax.f32 %v770, 0.0
    %v803 = vmax.f32 %v771, 0.0
    %v804 = vmax.f32 %v772, 0.0
    %v805 = vmax.f32 %v773, 0.0
    %v806 = vmax.f32 %v774, 0.0
    %v807 = vmax.f32 %v775, 0.0
    %v808 = vmax.f32 %v776, 0.0
    %v809 = vmax.f32 %v777, 0.0
    %v810 = vmax.f32 %v778, 0.0
    %v811 = vmax.f32 %v779, 0.0
    %v812 = vld [vmem:[%s4] sm:$0x1]
    %v814 = vlaneseq
    %v815 = vshrl.u32 %v814, 7
    %v816 = vsub.s32 0, %v815
    %v817 = vrot.slane %v812, %v816
    %v819 = vadd.f32 %v558, %v817
    %v820 = vadd.f32 %v564, %v817
    %v821 = vadd.f32 %v570, %v817
    %v822 = vadd.f32 %v576, %v817
    %v823 = vadd.f32 %v582, %v817
    %v824 = vadd.f32 %v588, %v817
    %v825 = vadd.f32 %v594, %v817
    %v826 = vadd.f32 %v600, %v817
    %v827 = vadd.f32 %v606, %v817
    %v828 = vadd.f32 %v612, %v817
    %v829 = vadd.f32 %v618, %v817
    %v830 = vadd.f32 %v624, %v817
    %v831 = vadd.f32 %v630, %v817
    %v832 = vadd.f32 %v636, %v817
    %v833 = vadd.f32 %v642, %v817
    %v834 = vadd.f32 %v648, %v817
    %v835 = vadd.f32 %v654, %v817
    %v836 = vadd.f32 %v660, %v817
    %v837 = vadd.f32 %v666, %v817
    %v838 = vadd.f32 %v672, %v817
    %v839 = vadd.f32 %v678, %v817
    %v840 = vadd.f32 %v684, %v817
    %v841 = vadd.f32 %v690, %v817
    %v842 = vadd.f32 %v696, %v817
    %v843 = vadd.f32 %v702, %v817
    %v844 = vadd.f32 %v708, %v817
    %v845 = vadd.f32 %v714, %v817
    %v846 = vadd.f32 %v720, %v817
    %v847 = vadd.f32 %v726, %v817
    %v848 = vadd.f32 %v732, %v817
    %v849 = vadd.f32 %v738, %v817
    %v850 = vadd.f32 %v744, %v817
    %851 = vst [vmem:[#allocation5] sm:$0xff] %v819
    %852 = vst [vmem:[#allocation5 + $0x8] sm:$0xff] %v820
    %853 = vst [vmem:[#allocation5 + $0x10] sm:$0xff] %v821
    %854 = vst [vmem:[#allocation5 + $0x18] sm:$0xff] %v822
    %855 = vst [vmem:[#allocation5 + $0x20] sm:$0xff] %v823
    %856 = vst [vmem:[#allocation5 + $0x28] sm:$0xff] %v824
    %857 = vst [vmem:[#allocation5 + $0x30] sm:$0xff] %v825
    %858 = vst [vmem:[#allocation5 + $0x38] sm:$0xff] %v826
    %859 = vst [vmem:[#allocation5 + $0x40] sm:$0xff] %v827
    %860 = vst [vmem:[#allocation5 + $0x48] sm:$0xff] %v828
    %861 = vst [vmem:[#allocation5 + $0x50] sm:$0xff] %v829
    %862 = vst [vmem:[#allocation5 + $0x58] sm:$0xff] %v830
    %863 = vst [vmem:[#allocation5 + $0x60] sm:$0xff] %v831
    %864 = vst [vmem:[#allocation5 + $0x68] sm:$0xff] %v832
    %865 = vst [vmem:[#allocation5 + $0x70] sm:$0xff] %v833
    %866 = vst [vmem:[#allocation5 + $0x78] sm:$0xff] %v834
    %867 = vst [vmem:[#allocation5 + $0x80] sm:$0xff] %v835
    %868 = vst [vmem:[#allocation5 + $0x88] sm:$0xff] %v836
    %869 = vst [vmem:[#allocation5 + $0x90] sm:$0xff] %v837
    %870 = vst [vmem:[#allocation5 + $0x98] sm:$0xff] %v838
    %871 = vst [vmem:[#allocation5 + $0xa0] sm:$0xff] %v839
    %872 = vst [vmem:[#allocation5 + $0xa8] sm:$0xff] %v840
    %873 = vst [vmem:[#allocation5 + $0xb0] sm:$0xff] %v841
    %874 = vst [vmem:[#allocation5 + $0xb8] sm:$0xff] %v842
    %875 = vst [vmem:[#allocation5 + $0xc0] sm:$0xff] %v843
    %876 = vst [vmem:[#allocation5 + $0xc8] sm:$0xff] %v844
    %877 = vst [vmem:[#allocation5 + $0xd0] sm:$0xff] %v845
    %878 = vst [vmem:[#allocation5 + $0xd8] sm:$0xff] %v846
    %879 = vst [vmem:[#allocation5 + $0xe0] sm:$0xff] %v847
    %880 = vst [vmem:[#allocation5 + $0xe8] sm:$0xff] %v848
    %881 = vst [vmem:[#allocation5 + $0xf0] sm:$0xff] %v849
    %882 = vst [vmem:[#allocation5 + $0xf8] sm:$0xff] %v850
    %v883 = vld [vmem:[#allocation5] sm:$0xff]
    %v884 = vld [vmem:[#allocation5 + $0x8] sm:$0xff]
    %v885 = vld [vmem:[#allocation5 + $0x10] sm:$0xff]
    %v886 = vld [vmem:[#allocation5 + $0x18] sm:$0xff]
    %v887 = vld [vmem:[#allocation5 + $0x20] sm:$0xff]
    %v888 = vld [vmem:[#allocation5 + $0x28] sm:$0xff]
    %v889 = vld [vmem:[#allocation5 + $0x30] sm:$0xff]
    %v890 = vld [vmem:[#allocation5 + $0x38] sm:$0xff]
    %v891 = vld [vmem:[#allocation5 + $0x40] sm:$0xff]
    %v892 = vld [vmem:[#allocation5 + $0x48] sm:$0xff]
    %v893 = vld [vmem:[#allocation5 + $0x50] sm:$0xff]
    %v894 = vld [vmem:[#allocation5 + $0x58] sm:$0xff]
    %v895 = vld [vmem:[#allocation5 + $0x60] sm:$0xff]
    %v896 = vld [vmem:[#allocation5 + $0x68] sm:$0xff]
    %v897 = vld [vmem:[#allocation5 + $0x70] sm:$0xff]
    %v898 = vld [vmem:[#allocation5 + $0x78] sm:$0xff]
    %v899 = vld [vmem:[#allocation5 + $0x80] sm:$0xff]
    %v900 = vld [vmem:[#allocation5 + $0x88] sm:$0xff]
    %v901 = vld [vmem:[#allocation5 + $0x90] sm:$0xff]
    %v902 = vld [vmem:[#allocation5 + $0x98] sm:$0xff]
    %v903 = vld [vmem:[#allocation5 + $0xa0] sm:$0xff]
    %v904 = vld [vmem:[#allocation5 + $0xa8] sm:$0xff]
    %v905 = vld [vmem:[#allocation5 + $0xb0] sm:$0xff]
    %v906 = vld [vmem:[#allocation5 + $0xb8] sm:$0xff]
    %v907 = vld [vmem:[#allocation5 + $0xc0] sm:$0xff]
    %v908 = vld [vmem:[#allocation5 + $0xc8] sm:$0xff]
    %v909 = vld [vmem:[#allocation5 + $0xd0] sm:$0xff]
    %v910 = vld [vmem:[#allocation5 + $0xd8] sm:$0xff]
    %v911 = vld [vmem:[#allocation5 + $0xe0] sm:$0xff]
    %v912 = vld [vmem:[#allocation5 + $0xe8] sm:$0xff]
    %v913 = vld [vmem:[#allocation5 + $0xf0] sm:$0xff]
    %v914 = vld [vmem:[#allocation5 + $0xf8] sm:$0xff]
    %v915 = vld [vmem:[#allocation2] sm:$0xff]
    %v916 = vld [vmem:[#allocation2 + $0x8] sm:$0xff]
    %v917 = vld [vmem:[#allocation2 + $0x10] sm:$0xff]
    %v918 = vld [vmem:[#allocation2 + $0x18] sm:$0xff]
    %v919 = vld [vmem:[#allocation2 + $0x20] sm:$0xff]
    %v920 = vld [vmem:[#allocation2 + $0x28] sm:$0xff]
    %v921 = vld [vmem:[#allocation2 + $0x30] sm:$0xff]
    %v922 = vld [vmem:[#allocation2 + $0x38] sm:$0xff]
    %v923 = vld [vmem:[#allocation2 + $0x40] sm:$0xff]
    %v924 = vld [vmem:[#allocation2 + $0x48] sm:$0xff]
    %v925 = vld [vmem:[#allocation2 + $0x50] sm:$0xff]
    %v926 = vld [vmem:[#allocation2 + $0x58] sm:$0xff]
    %v927 = vld [vmem:[#allocation2 + $0x60] sm:$0xff]
    %v928 = vld [vmem:[#allocation2 + $0x68] sm:$0xff]
    %v929 = vld [vmem:[#allocation2 + $0x70] sm:$0xff]
    %v930 = vld [vmem:[#allocation2 + $0x78] sm:$0xff]
    %931 = vmatprep.subr.mxu0 0.0
    %932 = vmatpush1.msra.mxu0 %v930
    %933 = vmatprep.subr.mxu0 0.0
    %934 = vmatpush1.msra.mxu0 %v929
    %935 = vmatprep.subr.mxu0 0.0
    %936 = vmatpush1.msra.mxu0 %v928
    %937 = vmatprep.subr.mxu0 0.0
    %938 = vmatpush1.msra.mxu0 %v927
    %939 = vmatprep.subr.mxu0 0.0
    %940 = vmatpush1.msra.mxu0 %v926
    %941 = vmatprep.subr.mxu0 0.0
    %942 = vmatpush1.msra.mxu0 %v925
    %943 = vmatprep.subr.mxu0 0.0
    %944 = vmatpush1.msra.mxu0 %v924
    %945 = vmatprep.subr.mxu0 0.0
    %946 = vmatpush1.msra.mxu0 %v923
    %947 = vmatprep.subr.mxu0 0.0
    %948 = vmatpush1.msra.mxu0 %v922
    %949 = vmatprep.subr.mxu0 0.0
    %950 = vmatpush1.msra.mxu0 %v921
    %951 = vmatprep.subr.mxu0 0.0
    %952 = vmatpush1.msra.mxu0 %v920
    %953 = vmatprep.subr.mxu0 0.0
    %954 = vmatpush1.msra.mxu0 %v919
    %955 = vmatprep.subr.mxu0 0.0
    %956 = vmatpush1.msra.mxu0 %v918
    %957 = vmatprep.subr.mxu0 0.0
    %958 = vmatpush1.msra.mxu0 %v917
    %959 = vmatprep.subr.mxu0 0.0
    %960 = vmatpush1.msra.mxu0 %v916
    %961 = vmatprep.subr.mxu0 0.0
    %962 = vmatpush1.msra.mxu0 %v915
    %963 = vmatprep.subr.mxu0 0.0
    %964 = vmatpush2.msra.mxu0 0.0
    %965 = vmatprep.subr.mxu0 0.0
    %966 = vmatpush2.msra.mxu0 0.0
    %967 = vmatprep.subr.mxu0 0.0
    %968 = vmatpush2.msra.mxu0 0.0
    %969 = vmatprep.subr.mxu0 0.0
    %970 = vmatpush2.msra.mxu0 0.0
    %971 = vmatprep.subr.mxu0 0.0
    %972 = vmatpush2.msra.mxu0 0.0
    %973 = vmatprep.subr.mxu0 0.0
    %974 = vmatpush2.msra.mxu0 0.0
    %975 = vmatprep.subr.mxu0 0.0
    %976 = vmatpush2.msra.mxu0 0.0
    %977 = vmatprep.subr.mxu0 0.0
    %978 = vmatpush2.msra.mxu0 0.0
    %979 = vmatprep.subr.mxu0 0.0
    %980 = vmatpush2.msra.mxu0 0.0
    %981 = vmatprep.subr.mxu0 0.0
    %982 = vmatpush2.msra.mxu0 0.0
    %983 = vmatprep.subr.mxu0 0.0
    %984 = vmatpush2.msra.mxu0 0.0
    %985 = vmatprep.subr.mxu0 0.0
    %986 = vmatpush2.msra.mxu0 0.0
    %987 = vmatprep.subr.mxu0 0.0
    %988 = vmatpush2.msra.mxu0 0.0
    %989 = vmatprep.subr.mxu0 0.0
    %990 = vmatpush2.msra.mxu0 0.0
    %991 = vmatprep.subr.mxu0 0.0
    %992 = vmatpush2.msra.mxu0 0.0
    %993 = vmatprep.subr.mxu0 0.0
    %994 = vmatpush2.msra.mxu0 0.0
    %995 = vmatprep.mubr.f32.mxu0 0.0
    %996 = vmatmul.mubr.f32.gmra.mxu0 %v780
    %v997 = vpop.f32.mrf.mxu0
    %v998 = vadd.f32 0.0, %v997
    %v999 = vpop.f32.mrf.mxu0
    %1000 = vmatprep.mubr.f32.mxu0 0.0
    %1001 = vmatmul.mubr.f32.gmra.mxu0 %v781
    %v1002 = vpop.f32.mrf.mxu0
    %v1003 = vadd.f32 0.0, %v1002
    %v1004 = vpop.f32.mrf.mxu0
    %1005 = vmatprep.mubr.f32.mxu0 0.0
    %1006 = vmatmul.mubr.f32.gmra.mxu0 %v782
    %v1007 = vpop.f32.mrf.mxu0
    %v1008 = vadd.f32 0.0, %v1007
    %v1009 = vpop.f32.mrf.mxu0
    %1010 = vmatprep.mubr.f32.mxu0 0.0
    %1011 = vmatmul.mubr.f32.gmra.mxu0 %v783
    %v1012 = vpop.f32.mrf.mxu0
    %v1013 = vadd.f32 0.0, %v1012
    %v1014 = vpop.f32.mrf.mxu0
    %1015 = vmatprep.mubr.f32.mxu0 0.0
    %1016 = vmatmul.mubr.f32.gmra.mxu0 %v784
    %v1017 = vpop.f32.mrf.mxu0
    %v1018 = vadd.f32 0.0, %v1017
    %v1019 = vpop.f32.mrf.mxu0
    %1020 = vmatprep.mubr.f32.mxu0 0.0
    %1021 = vmatmul.mubr.f32.gmra.mxu0 %v785
    %v1022 = vpop.f32.mrf.mxu0
    %v1023 = vadd.f32 0.0, %v1022
    %v1024 = vpop.f32.mrf.mxu0
    %1025 = vmatprep.mubr.f32.mxu0 0.0
    %1026 = vmatmul.mubr.f32.gmra.mxu0 %v786
    %v1027 = vpop.f32.mrf.mxu0
    %v1028 = vadd.f32 0.0, %v1027
    %v1029 = vpop.f32.mrf.mxu0
    %1030 = vmatprep.mubr.f32.mxu0 0.0
    %1031 = vmatmul.mubr.f32.gmra.mxu0 %v787
    %v1032 = vpop.f32.mrf.mxu0
    %v1033 = vadd.f32 0.0, %v1032
    %v1034 = vpop.f32.mrf.mxu0
    %1035 = vmatprep.mubr.f32.mxu0 0.0
    %1036 = vmatmul.mubr.f32.gmra.mxu0 %v788
    %v1037 = vpop.f32.mrf.mxu0
    %v1038 = vadd.f32 0.0, %v1037
    %v1039 = vpop.f32.mrf.mxu0
    %1040 = vmatprep.mubr.f32.mxu0 0.0
    %1041 = vmatmul.mubr.f32.gmra.mxu0 %v789
    %v1042 = vpop.f32.mrf.mxu0
    %v1043 = vadd.f32 0.0, %v1042
    %v1044 = vpop.f32.mrf.mxu0
    %1045 = vmatprep.mubr.f32.mxu0 0.0
    %1046 = vmatmul.mubr.f32.gmra.mxu0 %v790
    %v1047 = vpop.f32.mrf.mxu0
    %v1048 = vadd.f32 0.0, %v1047
    %v1049 = vpop.f32.mrf.mxu0
    %1050 = vmatprep.mubr.f32.mxu0 0.0
    %1051 = vmatmul.mubr.f32.gmra.mxu0 %v791
    %v1052 = vpop.f32.mrf.mxu0
    %v1053 = vadd.f32 0.0, %v1052
    %v1054 = vpop.f32.mrf.mxu0
    %1055 = vmatprep.mubr.f32.mxu0 0.0
    %1056 = vmatmul.mubr.f32.gmra.mxu0 %v792
    %v1057 = vpop.f32.mrf.mxu0
    %v1058 = vadd.f32 0.0, %v1057
    %v1059 = vpop.f32.mrf.mxu0
    %1060 = vmatprep.mubr.f32.mxu0 0.0
    %1061 = vmatmul.mubr.f32.gmra.mxu0 %v793
    %v1062 = vpop.f32.mrf.mxu0
    %v1063 = vadd.f32 0.0, %v1062
    %v1064 = vpop.f32.mrf.mxu0
    %1065 = vmatprep.mubr.f32.mxu0 0.0
    %1066 = vmatmul.mubr.f32.gmra.mxu0 %v794
    %v1067 = vpop.f32.mrf.mxu0
    %v1068 = vadd.f32 0.0, %v1067
    %v1069 = vpop.f32.mrf.mxu0
    %1070 = vmatprep.mubr.f32.mxu0 0.0
    %1071 = vmatmul.mubr.f32.gmra.mxu0 %v795
    %v1072 = vpop.f32.mrf.mxu0
    %v1073 = vadd.f32 0.0, %v1072
    %v1074 = vpop.f32.mrf.mxu0
    %1075 = vmatprep.mubr.f32.mxu0 0.0
    %1076 = vmatmul.mubr.f32.gmra.mxu0 %v796
    %v1077 = vpop.f32.mrf.mxu0
    %v1078 = vadd.f32 0.0, %v1077
    %v1079 = vpop.f32.mrf.mxu0
    %1080 = vmatprep.mubr.f32.mxu0 0.0
    %1081 = vmatmul.mubr.f32.gmra.mxu0 %v797
    %v1082 = vpop.f32.mrf.mxu0
    %v1083 = vadd.f32 0.0, %v1082
    %v1084 = vpop.f32.mrf.mxu0
    %1085 = vmatprep.mubr.f32.mxu0 0.0
    %1086 = vmatmul.mubr.f32.gmra.mxu0 %v798
    %v1087 = vpop.f32.mrf.mxu0
    %v1088 = vadd.f32 0.0, %v1087
    %v1089 = vpop.f32.mrf.mxu0
    %1090 = vmatprep.mubr.f32.mxu0 0.0
    %1091 = vmatmul.mubr.f32.gmra.mxu0 %v799
    %v1092 = vpop.f32.mrf.mxu0
    %v1093 = vadd.f32 0.0, %v1092
    %v1094 = vpop.f32.mrf.mxu0
    %1095 = vmatprep.mubr.f32.mxu0 0.0
    %1096 = vmatmul.mubr.f32.gmra.mxu0 %v800
    %v1097 = vpop.f32.mrf.mxu0
    %v1098 = vadd.f32 0.0, %v1097
    %v1099 = vpop.f32.mrf.mxu0
    %1100 = vmatprep.mubr.f32.mxu0 0.0
    %1101 = vmatmul.mubr.f32.gmra.mxu0 %v801
    %v1102 = vpop.f32.mrf.mxu0
    %v1103 = vadd.f32 0.0, %v1102
    %v1104 = vpop.f32.mrf.mxu0
    %1105 = vmatprep.mubr.f32.mxu0 0.0
    %1106 = vmatmul.mubr.f32.gmra.mxu0 %v802
    %v1107 = vpop.f32.mrf.mxu0
    %v1108 = vadd.f32 0.0, %v1107
    %v1109 = vpop.f32.mrf.mxu0
    %1110 = vmatprep.mubr.f32.mxu0 0.0
    %1111 = vmatmul.mubr.f32.gmra.mxu0 %v803
    %v1112 = vpop.f32.mrf.mxu0
    %v1113 = vadd.f32 0.0, %v1112
    %v1114 = vpop.f32.mrf.mxu0
    %1115 = vmatprep.mubr.f32.mxu0 0.0
    %1116 = vmatmul.mubr.f32.gmra.mxu0 %v804
    %v1117 = vpop.f32.mrf.mxu0
    %v1118 = vadd.f32 0.0, %v1117
    %v1119 = vpop.f32.mrf.mxu0
    %1120 = vmatprep.mubr.f32.mxu0 0.0
    %1121 = vmatmul.mubr.f32.gmra.mxu0 %v805
    %v1122 = vpop.f32.mrf.mxu0
    %v1123 = vadd.f32 0.0, %v1122
    %v1124 = vpop.f32.mrf.mxu0
    %1125 = vmatprep.mubr.f32.mxu0 0.0
    %1126 = vmatmul.mubr.f32.gmra.mxu0 %v806
    %v1127 = vpop.f32.mrf.mxu0
    %v1128 = vadd.f32 0.0, %v1127
    %v1129 = vpop.f32.mrf.mxu0
    %1130 = vmatprep.mubr.f32.mxu0 0.0
    %1131 = vmatmul.mubr.f32.gmra.mxu0 %v807
    %v1132 = vpop.f32.mrf.mxu0
    %v1133 = vadd.f32 0.0, %v1132
    %v1134 = vpop.f32.mrf.mxu0
    %1135 = vmatprep.mubr.f32.mxu0 0.0
    %1136 = vmatmul.mubr.f32.gmra.mxu0 %v808
    %v1137 = vpop.f32.mrf.mxu0
    %v1138 = vadd.f32 0.0, %v1137
    %v1139 = vpop.f32.mrf.mxu0
    %1140 = vmatprep.mubr.f32.mxu0 0.0
    %1141 = vmatmul.mubr.f32.gmra.mxu0 %v809
    %v1142 = vpop.f32.mrf.mxu0
    %v1143 = vadd.f32 0.0, %v1142
    %v1144 = vpop.f32.mrf.mxu0
    %1145 = vmatprep.mubr.f32.mxu0 0.0
    %1146 = vmatmul.mubr.f32.gmra.mxu0 %v810
    %v1147 = vpop.f32.mrf.mxu0
    %v1148 = vadd.f32 0.0, %v1147
    %v1149 = vpop.f32.mrf.mxu0
    %1150 = vmatprep.mubr.f32.mxu0 0.0
    %1151 = vmatmul.mubr.f32.gmra.mxu0 %v811
    %v1152 = vpop.f32.mrf.mxu0
    %v1153 = vadd.f32 0.0, %v1152
    %v1154 = vpop.f32.mrf.mxu0
    %1155 = vdwg.mxu0
    %v1156 = vadd.f32 %v883, %v998
    %v1157 = vadd.f32 %v884, %v1003
    %v1158 = vadd.f32 %v885, %v1008
    %v1159 = vadd.f32 %v886, %v1013
    %v1160 = vadd.f32 %v887, %v1018
    %v1161 = vadd.f32 %v888, %v1023
    %v1162 = vadd.f32 %v889, %v1028
    %v1163 = vadd.f32 %v890, %v1033
    %v1164 = vadd.f32 %v891, %v1038
    %v1165 = vadd.f32 %v892, %v1043
    %v1166 = vadd.f32 %v893, %v1048
    %v1167 = vadd.f32 %v894, %v1053
    %v1168 = vadd.f32 %v895, %v1058
    %v1169 = vadd.f32 %v896, %v1063
    %v1170 = vadd.f32 %v897, %v1068
    %v1171 = vadd.f32 %v898, %v1073
    %v1172 = vadd.f32 %v899, %v1078
    %v1173 = vadd.f32 %v900, %v1083
    %v1174 = vadd.f32 %v901, %v1088
    %v1175 = vadd.f32 %v902, %v1093
    %v1176 = vadd.f32 %v903, %v1098
    %v1177 = vadd.f32 %v904, %v1103
    %v1178 = vadd.f32 %v905, %v1108
    %v1179 = vadd.f32 %v906, %v1113
    %v1180 = vadd.f32 %v907, %v1118
    %v1181 = vadd.f32 %v908, %v1123
    %v1182 = vadd.f32 %v909, %v1128
    %v1183 = vadd.f32 %v910, %v1133
    %v1184 = vadd.f32 %v911, %v1138
    %v1185 = vadd.f32 %v912, %v1143
    %v1186 = vadd.f32 %v913, %v1148
    %v1187 = vadd.f32 %v914, %v1153
    %1188 = vst [vmem:[#allocation5] sm:$0xff] %v1156
    %1189 = vst [vmem:[#allocation5 + $0x8] sm:$0xff] %v1157
    %1190 = vst [vmem:[#allocation5 + $0x10] sm:$0xff] %v1158
    %1191 = vst [vmem:[#allocation5 + $0x18] sm:$0xff] %v1159
    %1192 = vst [vmem:[#allocation5 + $0x20] sm:$0xff] %v1160
    %1193 = vst [vmem:[#allocation5 + $0x28] sm:$0xff] %v1161
    %1194 = vst [vmem:[#allocation5 + $0x30] sm:$0xff] %v1162
    %1195 = vst [vmem:[#allocation5 + $0x38] sm:$0xff] %v1163
    %1196 = vst [vmem:[#allocation5 + $0x40] sm:$0xff] %v1164
    %1197 = vst [vmem:[#allocation5 + $0x48] sm:$0xff] %v1165
    %1198 = vst [vmem:[#allocation5 + $0x50] sm:$0xff] %v1166
    %1199 = vst [vmem:[#allocation5 + $0x58] sm:$0xff] %v1167
    %1200 = vst [vmem:[#allocation5 + $0x60] sm:$0xff] %v1168
    %1201 = vst [vmem:[#allocation5 + $0x68] sm:$0xff] %v1169
    %1202 = vst [vmem:[#allocation5 + $0x70] sm:$0xff] %v1170
    %1203 = vst [vmem:[#allocation5 + $0x78] sm:$0xff] %v1171
    %1204 = vst [vmem:[#allocation5 + $0x80] sm:$0xff] %v1172
    %1205 = vst [vmem:[#allocation5 + $0x88] sm:$0xff] %v1173
    %1206 = vst [vmem:[#allocation5 + $0x90] sm:$0xff] %v1174
    %1207 = vst [vmem:[#allocation5 + $0x98] sm:$0xff] %v1175
    %1208 = vst [vmem:[#allocation5 + $0xa0] sm:$0xff] %v1176
    %1209 = vst [vmem:[#allocation5 + $0xa8] sm:$0xff] %v1177
    %1210 = vst [vmem:[#allocation5 + $0xb0] sm:$0xff] %v1178
    %1211 = vst [vmem:[#allocation5 + $0xb8] sm:$0xff] %v1179
    %1212 = vst [vmem:[#allocation5 + $0xc0] sm:$0xff] %v1180
    %1213 = vst [vmem:[#allocation5 + $0xc8] sm:$0xff] %v1181
    %1214 = vst [vmem:[#allocation5 + $0xd0] sm:$0xff] %v1182
    %1215 = vst [vmem:[#allocation5 + $0xd8] sm:$0xff] %v1183
    %1216 = vst [vmem:[#allocation5 + $0xe0] sm:$0xff] %v1184
    %1217 = vst [vmem:[#allocation5 + $0xe8] sm:$0xff] %v1185
    %1218 = vst [vmem:[#allocation5 + $0xf0] sm:$0xff] %v1186
    %1219 = vst [vmem:[#allocation5 + $0xf8] sm:$0xff] %v1187
    // Predicated region
    $region26: #{tpu_custom_call.1} parent=1 // pred_check
      _
    $region27: #{tpu_custom_call.1} parent=1 // pred_check_branch
      %1221 = sbr.rel (0) target = $region29
    $region28: #{tpu_custom_call.1} parent=1 // pred_region
      %s1223 = ssub.s32 4096, 4096
      %1224 = vsyncadd [#allocation4], %s1223
      %s1225 = sshll.u32 [#allocation5], 4
      %s1226 = int_to_ptr.vmem [resolvable:$true] %s1225
      %1231 = dma.vmem_to_hbm [thread:$0]  %s1226, 4096, %s5, [#allocation4], 128, 128, 8
    $region29: #{tpu_custom_call.1} parent=1 // pred_fallthru
      _
    // Predicated region
    $region30: #{tpu_custom_call.1} parent=1 // pred_check
      _
    $region31: #{tpu_custom_call.1} parent=1 // pred_check_branch
      %1233 = sbr.rel (0) target = $region33
    $region32: #{tpu_custom_call.1} parent=1 // pred_region
      %1234 = dma.done [#allocation4], 4096
    $region33: #{tpu_custom_call.1} parent=1 // pred_fallthru
      _
    %1235 = vsyncpa [#allocation3], 1
    %1236 = vsyncpa [#allocation4], 1

</llo_original>
